<compile_context>
chip_gen: v7x
topology: tpu7x:2x2x1
jax: 0.10.0
libtpu: 0.0.40
codegen_flags: <defaults>
</compile_context>

<pallas_src>
import jax
import jax.numpy as jnp
from jax import lax
from jax.experimental import pallas as pl
from jax.experimental.pallas import tpu as pltpu

# Small config consistent with the module: window_size=L, embedding=E, reduction=4.
B, L, E = 2, 16, 32
RED = 4
H = L // RED            # bottleneck width of the two Linear layers


# ----------------------------------------------------------------------------- kernel
def cnn_attention1_kernel(x_ref, weff_ref, beff_ref, w2eff_ref, b2eff_ref, o_ref):
    x = x_ref[...]                                                   # (Bt, L*E) f32

    # Fused Conv1d + Linear(L -> H) + ReLU  (single MXU matmul, K = L*E).
    h = jnp.dot(x, weff_ref[...], preferred_element_type=jnp.float32) + beff_ref[...]
    h = jnp.maximum(h, 0.0)                                          # (Bt, H)
    # TODO(synk): Dropout is the identity here (inference/eval mode, no RNG drop).

    # Fused Linear(H -> L) + repeat-over-E + Sigmoid (second MXU matmul, N = L*E).
    a = jnp.dot(h, w2eff_ref[...], preferred_element_type=jnp.float32) + b2eff_ref[...]
    att = jax.nn.sigmoid(a)                                          # (Bt, L*E)

    # out = x * att  (att already replicated over the embedding dim by W2eff/b2eff).
    o_ref[...] = (x * att).astype(o_ref.dtype)


# ----------------------------------------------------------------------------- wrapper
def cnn_attention1(x, weff, beff, w2eff, b2eff, *, block_b=128):
    Bsz, Ll, Ee = x.shape
    D = Ll * Ee
    Hh = weff.shape[1]

    x_flat = x.reshape(Bsz, D)                      # lane-dense (B, 512) view

    # Batch tiling: one lane-dense block per grid step; pad batch if needed.
    if Bsz <= block_b:
        bt, bp = Bsz, Bsz                           # single block == full dim (legal)
    else:
        bt = block_b                                # multiple of 8 (sublane aligned)
        bp = pl.cdiv(Bsz, bt) * bt
    if bp != Bsz:
        x_flat = jnp.pad(x_flat, ((0, bp - Bsz), (0, 0)))
    grid = (bp // bt,)

    flops = 2 * bp * D * Hh + 2 * bp * Hh * D + bp * D
    cost = pl.CostEstimate(
        flops=flops,
        transcendentals=bp * D,                                      # sigmoid
        bytes_accessed=4 * (2 * bp * D + D * Hh + Hh * D + Hh + D),
    )

    out = pl.pallas_call(
        cnn_attention1_kernel,
        out_shape=jax.ShapeDtypeStruct((bp, D), x.dtype),
        grid_spec=pltpu.PrefetchScalarGridSpec(
            num_scalar_prefetch=0,
            grid=grid,
            in_specs=[
                pl.BlockSpec((bt, D), lambda i: (i, 0)),             # x tile
                pl.BlockSpec((D, Hh), lambda i: (0, 0)),             # Weff (resident)
                pl.BlockSpec((1, Hh), lambda i: (0, 0)),             # beff
                pl.BlockSpec((Hh, D), lambda i: (0, 0)),             # W2eff (resident)
                pl.BlockSpec((1, D), lambda i: (0, 0)),              # b2eff
            ],
            out_specs=pl.BlockSpec((bt, D), lambda i: (i, 0)),
        ),
        compiler_params=pltpu.CompilerParams(
            dimension_semantics=("parallel",),                       # megacore sharding
        ),
        cost_estimate=cost,
    )(x_flat, weff, beff, w2eff, b2eff)

    return out[:Bsz].reshape(Bsz, Ll, Ee)


# --------------------------------------------------------------- parameter fusion (host)
def fuse_params(conv_w, conv_b, lin1_w, lin1_b, lin2_w, lin2_b, Ll, Ee):
    """Fold Conv1d into Linear1 and the repeat-over-E into Linear2 (pure linear algebra)."""
    Hh = lin1_w.shape[0]
    w1_t = lin1_w.T                                                  # (L, H)
    zrow = jnp.zeros((1, Hh), w1_t.dtype)
    w1_next = jnp.concatenate([w1_t[1:], zrow], axis=0)              # W1t[l+1], zero at l=L-1
    w1_prev = jnp.concatenate([zrow, w1_t[:-1]], axis=0)             # W1t[l-1], zero at l=0

    taps = jnp.transpose(conv_w[0], (1, 0))                          # (3, E): taps[k, e]
    weff = (taps[0][None, :, None] * w1_next[:, None, :]
            + taps[1][None, :, None] * w1_t[:, None, :]
            + taps[2][None, :, None] * w1_prev[:, None, :])          # (L, E, H)
    weff = weff.reshape(Ll * Ee, Hh)                                 # (L*E, H)
    beff = (conv_b[0] * jnp.sum(w1_t, axis=0) + lin1_b)[None, :]     # (1, H)

    w2eff = jnp.repeat(lin2_w.T, Ee, axis=1)                         # (H, L*E)
    b2eff = jnp.repeat(lin2_b, Ee)[None, :]                          # (1, L*E)
    return weff, beff, w2eff, b2eff


# ----------------------------------------------------------------------------- reference
def reference(x, conv_w, conv_b, lin1_w, lin1_b, lin2_w, lin2_b):
    """Pure-JAX reference mirroring the PyTorch forward (eval mode)."""
    xp = jnp.transpose(x, (0, 2, 1))                                  # (B, E, L)
    c = lax.conv_general_dilated(xp, conv_w, (1,), [(1, 1)],
                                 dimension_numbers=("NCH", "OIH", "NCH"))
    c = c + conv_b[None, :, None]                                     # (B, 1, L)
    h = jnp.maximum(c @ lin1_w.T + lin1_b, 0.0)                       # (B, 1, H)
    a = jax.nn.sigmoid(h @ lin2_w.T + lin2_b)                         # (B, 1, L)
    return x * jnp.transpose(a, (0, 2, 1))                            # (B, L, E)


if __name__ == "__main__":
    key = jax.random.PRNGKey(0)
    kx, kwc, kbc, kw1, kb1, kw2, kb2, kx2 = jax.random.split(key, 8)

    # Deterministic synthetic parameters in PyTorch layouts.
    conv_w = jax.random.normal(kwc, (1, E, 3), jnp.float32) * 0.1     # Conv1d weight (O, I, K)
    conv_b = jax.random.normal(kbc, (1,), jnp.float32) * 0.1          # Conv1d bias
    lin1_w = jax.random.normal(kw1, (H, L), jnp.float32) * 0.1        # Linear(L, H) weight
    lin1_b = jax.random.normal(kb1, (H,), jnp.float32) * 0.1
    lin2_w = jax.random.normal(kw2, (L, H), jnp.float32) * 0.1        # Linear(H, L) weight
    lin2_b = jax.random.normal(kb2, (L,), jnp.float32) * 0.1

    weff, beff, w2eff, b2eff = fuse_params(conv_w, conv_b, lin1_w, lin1_b,
                                           lin2_w, lin2_b, L, E)

    # --- small check: batch = 2 (module-sized input) --------------------------
    x = jax.random.normal(kx, (B, L, E), jnp.float32)
    out = jax.block_until_ready(cnn_attention1(x, weff, beff, w2eff, b2eff))
    ref = reference(x, conv_w, conv_b, lin1_w, lin1_b, lin2_w, lin2_b)
    assert out.shape == (B, L, E)
    assert jnp.allclose(out, ref, atol=1e-5, rtol=1e-5), "mismatch vs pure-JAX reference (B=2)"

    # --- grid-path check: batch large enough to tile + pad (exercises megacore path)
    B2 = 260
    x2 = jax.random.normal(kx2, (B2, L, E), jnp.float32)
    out2 = jax.block_until_ready(cnn_attention1(x2, weff, beff, w2eff, b2eff))
    ref2 = reference(x2, conv_w, conv_b, lin1_w, lin1_b, lin2_w, lin2_b)
    assert out2.shape == (B2, L, E)
    assert jnp.allclose(out2, ref2, atol=1e-5, rtol=1e-5), "mismatch vs pure-JAX reference (B=260)"

    print("KERNEL_OK")
</pallas_src>

<mosaic_0001>
module attributes {stable_mosaic.version = 11 : i64} {
  func.func @cnn_attention1_kernel(%arg0: i32, %arg1: memref<2x512xf32, #tpu.memory_space<vmem>>, %arg2: memref<512x4xf32, #tpu.memory_space<vmem>>, %arg3: memref<1x4xf32, #tpu.memory_space<vmem>>, %arg4: memref<4x512xf32, #tpu.memory_space<vmem>>, %arg5: memref<1x512xf32, #tpu.memory_space<vmem>>, %arg6: memref<2x512xf32, #tpu.memory_space<vmem>>) attributes {dimension_semantics = [#tpu.dimension_semantics<parallel>], iteration_bounds = array<i64: 1>, scalar_prefetch = 0 : i64, scratch_operands = 0 : i64, tpu.core_type = #tpu.core_type<tc>, window_params = [{transform_indices = @transform_0, window_bounds = array<i64: 2, 512>}, {pipeline_mode = #tpu.pipeline_mode<synchronous>, transform_indices = @transform_1, window_bounds = array<i64: 512, 4>}, {pipeline_mode = #tpu.pipeline_mode<synchronous>, transform_indices = @transform_2, window_bounds = array<i64: 1, 4>}, {pipeline_mode = #tpu.pipeline_mode<synchronous>, transform_indices = @transform_3, window_bounds = array<i64: 4, 512>}, {pipeline_mode = #tpu.pipeline_mode<synchronous>, transform_indices = @transform_4, window_bounds = array<i64: 1, 512>}, {transform_indices = @transform_5, window_bounds = array<i64: 2, 512>}]} {
    %c0 = arith.constant 0 : index
    %c0_0 = arith.constant 0 : index
    %0 = vector.load %arg1[%c0, %c0_0] : memref<2x512xf32, #tpu.memory_space<vmem>>, vector<2x512xf32>
    %c0_1 = arith.constant 0 : index
    %c0_2 = arith.constant 0 : index
    %1 = vector.load %arg2[%c0_1, %c0_2] : memref<512x4xf32, #tpu.memory_space<vmem>>, vector<512x4xf32>
    %cst = arith.constant dense<0.000000e+00> : vector<2x4xf32>
    %2 = tpu.matmul %0, %1, %cst {dimension_numbers = #tpu.dot_dimension_numbers<[1], [0], [0], [1], [0, 0, 1, 1], [], []>} : vector<2x512xf32>, vector<512x4xf32>, vector<2x4xf32> -> vector<2x4xf32>
    %c0_3 = arith.constant 0 : index
    %c0_4 = arith.constant 0 : index
    %3 = vector.load %arg3[%c0_3, %c0_4] : memref<1x4xf32, #tpu.memory_space<vmem>>, vector<1x4xf32>
    %4 = vector.broadcast %3 : vector<1x4xf32> to vector<2x4xf32>
    %5 = arith.addf %2, %4 : vector<2x4xf32>
    %cst_5 = arith.constant 0.000000e+00 : f32
    %6 = vector.broadcast %cst_5 : f32 to vector<2x4xf32>
    %7 = arith.maximumf %5, %6 : vector<2x4xf32>
    %c0_6 = arith.constant 0 : index
    %c0_7 = arith.constant 0 : index
    %8 = vector.load %arg4[%c0_6, %c0_7] : memref<4x512xf32, #tpu.memory_space<vmem>>, vector<4x512xf32>
    %cst_8 = arith.constant dense<0.000000e+00> : vector<2x512xf32>
    %9 = tpu.matmul %7, %8, %cst_8 {dimension_numbers = #tpu.dot_dimension_numbers<[1], [0], [0], [1], [0, 0, 1, 1], [], []>} : vector<2x4xf32>, vector<4x512xf32>, vector<2x512xf32> -> vector<2x512xf32>
    %c0_9 = arith.constant 0 : index
    %c0_10 = arith.constant 0 : index
    %10 = vector.load %arg5[%c0_9, %c0_10] : memref<1x512xf32, #tpu.memory_space<vmem>>, vector<1x512xf32>
    %11 = vector.broadcast %10 : vector<1x512xf32> to vector<2x512xf32>
    %12 = arith.addf %9, %11 : vector<2x512xf32>
    %13 = arith.negf %12 : vector<2x512xf32>
    %14 = math.exp %13 : vector<2x512xf32>
    %cst_11 = arith.constant 1.000000e+00 : f32
    %15 = vector.broadcast %cst_11 : f32 to vector<2x512xf32>
    %16 = arith.addf %15, %14 : vector<2x512xf32>
    %17 = arith.divf %15, %16 : vector<2x512xf32>
    %18 = arith.mulf %0, %17 : vector<2x512xf32>
    %c0_12 = arith.constant 0 : index
    %c0_13 = arith.constant 0 : index
    %19 = vector.load %arg6[%c0_12, %c0_13] : memref<2x512xf32, #tpu.memory_space<vmem>>, vector<2x512xf32>
    tpu.vector_store %arg6[%c0_12, %c0_13], %18 {strides = array<i32>} : memref<2x512xf32, #tpu.memory_space<vmem>>, vector<2x512xf32>,
    return
  }
  func.func @transform_0(%arg0: i32) -> (i32, i32) {
    %c0_i32 = arith.constant 0 : i32
    %c0_i32_0 = arith.constant 0 : i32
    return %arg0, %c0_i32 : i32, i32
  }
  func.func @transform_1(%arg0: i32) -> (i32, i32) {
    %c0_i32 = arith.constant 0 : i32
    %c0_i32_0 = arith.constant 0 : i32
    %c0_i32_1 = arith.constant 0 : i32
    return %c0_i32, %c0_i32_0 : i32, i32
  }
  func.func @transform_2(%arg0: i32) -> (i32, i32) {
    %c0_i32 = arith.constant 0 : i32
    %c0_i32_0 = arith.constant 0 : i32
    %c0_i32_1 = arith.constant 0 : i32
    return %c0_i32, %c0_i32_0 : i32, i32
  }
  func.func @transform_3(%arg0: i32) -> (i32, i32) {
    %c0_i32 = arith.constant 0 : i32
    %c0_i32_0 = arith.constant 0 : i32
    %c0_i32_1 = arith.constant 0 : i32
    return %c0_i32, %c0_i32_0 : i32, i32
  }
  func.func @transform_4(%arg0: i32) -> (i32, i32) {
    %c0_i32 = arith.constant 0 : i32
    %c0_i32_0 = arith.constant 0 : i32
    %c0_i32_1 = arith.constant 0 : i32
    return %c0_i32, %c0_i32_0 : i32, i32
  }
  func.func @transform_5(%arg0: i32) -> (i32, i32) {
    %c0_i32 = arith.constant 0 : i32
    %c0_i32_0 = arith.constant 0 : i32
    return %arg0, %c0_i32 : i32, i32
  }
}

</mosaic_0001>

<llo_original>
// kernel: tpu_custom_call.1
$region0: #{tpu_custom_call.1}
  #allocation0 [shape = 'u32[]', space=smem, size = 0x4, offset = 0x4, fixed_abs, tag = 'smem constant byte address 0x4 - core index']
  #allocation1 [shape = 'u32[144,128]{1,0:T(1,128)}', space=vmem, size = 0x12000, scoped, tag = 'internal scratch']
  %s0 = inlined_call_operand.vmem [shape: f32[2,512], index: 0, kind: input, shape index: {}]
  %s1 = inlined_call_operand.vmem [shape: f32[512,4], index: 1, kind: input, shape index: {}]
  %s2 = inlined_call_operand.vmem [shape: f32[1,4], index: 2, kind: input, shape index: {}]
  %s3 = inlined_call_operand.vmem [shape: f32[4,512], index: 3, kind: input, shape index: {}]
  %s4 = inlined_call_operand.vmem [shape: f32[1,512], index: 4, kind: input, shape index: {}]
  %s5 = inlined_call_operand.hbm [shape: f32[2,512], index: 5, kind: output, shape index: {}]
  %s6 = sld [smem:[#allocation0]]
  $region30: #{tpu_custom_call.1} parent=0
    _
  %s8 = ssub.s32 1, %s6
  %s9 = scalar_select 0, %s8, %s6
  $region1: #{tpu_custom_call.1} parent=0
    #allocation2 [shape = 'u8[4096]{0}', space=vmem, size = 0x1000, scoped, tag = 'output window, operand 0, single buffered']
    #allocation3 [shape = 's32[1]{0}', space=sflag, size = 0x4, scoped, tag = 'scoped memory for tpu_custom_call.1']
    %10 = vsyncpa [#allocation3], 0
    // Predicated region
    $region2: #{tpu_custom_call.1} parent=1 // pred_check
      _
    $region3: #{tpu_custom_call.1} parent=1 // pred_check_branch
      %12 = sbr.rel (0) target = $region5
    $region4: #{tpu_custom_call.1} parent=1 // pred_region
      _
    $region5: #{tpu_custom_call.1} parent=1 // pred_fallthru
      _
    // Predicated region
    $region6: #{tpu_custom_call.1} parent=1 // pred_check
      _
    $region7: #{tpu_custom_call.1} parent=1 // pred_check_branch
      %14 = sbr.rel (0) target = $region9
    $region8: #{tpu_custom_call.1} parent=1 // pred_region
      _
    $region9: #{tpu_custom_call.1} parent=1 // pred_fallthru
      _
    // Predicated region
    $region10: #{tpu_custom_call.1} parent=1 // pred_check
      _
    $region11: #{tpu_custom_call.1} parent=1 // pred_check_branch
      %16 = sbr.rel (0) target = $region13
    $region12: #{tpu_custom_call.1} parent=1 // pred_region
      _
    $region13: #{tpu_custom_call.1} parent=1 // pred_fallthru
      _
    // Predicated region
    $region14: #{tpu_custom_call.1} parent=1 // pred_check
      _
    $region15: #{tpu_custom_call.1} parent=1 // pred_check_branch
      %18 = sbr.rel (0) target = $region17
    $region16: #{tpu_custom_call.1} parent=1 // pred_region
      _
    $region17: #{tpu_custom_call.1} parent=1 // pred_fallthru
      _
    // Predicated region
    $region18: #{tpu_custom_call.1} parent=1 // pred_check
      _
    $region19: #{tpu_custom_call.1} parent=1 // pred_check_branch
      %20 = sbr.rel (0) target = $region21
    $region20: #{tpu_custom_call.1} parent=1 // pred_region
      _
    $region21: #{tpu_custom_call.1} parent=1 // pred_fallthru
      _
    %v21 = vld [vmem:[%s0] sm:$0xff]
    %v22 = vld [vmem:[%s1] sm:$0xff]
    %v23 = vld [vmem:[%s1 + $0x8] sm:$0xff]
    %v24 = vld [vmem:[%s1 + $0x10] sm:$0xff]
    %v25 = vld [vmem:[%s1 + $0x18] sm:$0xff]
    %v26 = vld [vmem:[%s1 + $0x20] sm:$0xff]
    %v27 = vld [vmem:[%s1 + $0x28] sm:$0xff]
    %v28 = vld [vmem:[%s1 + $0x30] sm:$0xff]
    %v29 = vld [vmem:[%s1 + $0x38] sm:$0xff]
    %v30 = vld [vmem:[%s1 + $0x40] sm:$0xff]
    %v31 = vld [vmem:[%s1 + $0x48] sm:$0xff]
    %v32 = vld [vmem:[%s1 + $0x50] sm:$0xff]
    %v33 = vld [vmem:[%s1 + $0x58] sm:$0xff]
    %v34 = vld [vmem:[%s1 + $0x60] sm:$0xff]
    %v35 = vld [vmem:[%s1 + $0x68] sm:$0xff]
    %v36 = vld [vmem:[%s1 + $0x70] sm:$0xff]
    %v37 = vld [vmem:[%s1 + $0x78] sm:$0xff]
    %v38 = vld [vmem:[%s1 + $0x80] sm:$0xff]
    %v39 = vld [vmem:[%s1 + $0x88] sm:$0xff]
    %v40 = vld [vmem:[%s1 + $0x90] sm:$0xff]
    %v41 = vld [vmem:[%s1 + $0x98] sm:$0xff]
    %v42 = vld [vmem:[%s1 + $0xa0] sm:$0xff]
    %v43 = vld [vmem:[%s1 + $0xa8] sm:$0xff]
    %v44 = vld [vmem:[%s1 + $0xb0] sm:$0xff]
    %v45 = vld [vmem:[%s1 + $0xb8] sm:$0xff]
    %v46 = vld [vmem:[%s1 + $0xc0] sm:$0xff]
    %v47 = vld [vmem:[%s1 + $0xc8] sm:$0xff]
    %v48 = vld [vmem:[%s1 + $0xd0] sm:$0xff]
    %v49 = vld [vmem:[%s1 + $0xd8] sm:$0xff]
    %v50 = vld [vmem:[%s1 + $0xe0] sm:$0xff]
    %v51 = vld [vmem:[%s1 + $0xe8] sm:$0xff]
    %v52 = vld [vmem:[%s1 + $0xf0] sm:$0xff]
    %v53 = vld [vmem:[%s1 + $0xf8] sm:$0xff]
    %v54 = vld [vmem:[%s1 + $0x100] sm:$0xff]
    %v55 = vld [vmem:[%s1 + $0x108] sm:$0xff]
    %v56 = vld [vmem:[%s1 + $0x110] sm:$0xff]
    %v57 = vld [vmem:[%s1 + $0x118] sm:$0xff]
    %v58 = vld [vmem:[%s1 + $0x120] sm:$0xff]
    %v59 = vld [vmem:[%s1 + $0x128] sm:$0xff]
    %v60 = vld [vmem:[%s1 + $0x130] sm:$0xff]
    %v61 = vld [vmem:[%s1 + $0x138] sm:$0xff]
    %v62 = vld [vmem:[%s1 + $0x140] sm:$0xff]
    %v63 = vld [vmem:[%s1 + $0x148] sm:$0xff]
    %v64 = vld [vmem:[%s1 + $0x150] sm:$0xff]
    %v65 = vld [vmem:[%s1 + $0x158] sm:$0xff]
    %v66 = vld [vmem:[%s1 + $0x160] sm:$0xff]
    %v67 = vld [vmem:[%s1 + $0x168] sm:$0xff]
    %v68 = vld [vmem:[%s1 + $0x170] sm:$0xff]
    %v69 = vld [vmem:[%s1 + $0x178] sm:$0xff]
    %v70 = vld [vmem:[%s1 + $0x180] sm:$0xff]
    %v71 = vld [vmem:[%s1 + $0x188] sm:$0xff]
    %v72 = vld [vmem:[%s1 + $0x190] sm:$0xff]
    %v73 = vld [vmem:[%s1 + $0x198] sm:$0xff]
    %v74 = vld [vmem:[%s1 + $0x1a0] sm:$0xff]
    %v75 = vld [vmem:[%s1 + $0x1a8] sm:$0xff]
    %v76 = vld [vmem:[%s1 + $0x1b0] sm:$0xff]
    %v77 = vld [vmem:[%s1 + $0x1b8] sm:$0xff]
    %v78 = vld [vmem:[%s1 + $0x1c0] sm:$0xff]
    %v79 = vld [vmem:[%s1 + $0x1c8] sm:$0xff]
    %v80 = vld [vmem:[%s1 + $0x1d0] sm:$0xff]
    %v81 = vld [vmem:[%s1 + $0x1d8] sm:$0xff]
    %v82 = vld [vmem:[%s1 + $0x1e0] sm:$0xff]
    %v83 = vld [vmem:[%s1 + $0x1e8] sm:$0xff]
    %v84 = vld [vmem:[%s1 + $0x1f0] sm:$0xff]
    %v85 = vld [vmem:[%s1 + $0x1f8] sm:$0xff]
    %v86 = vld [vmem:[%s2] sm:$0x1]
    %v88 = vlaneseq
    %v89 = vshrl.u32 %v88, 7
    %v90 = vsub.s32 0, %v89
    %v91 = vrot.slane %v86, %v90
    %v94 = vcombine.high %v21, %v21
    %v96 = vunpack.c.l.s4 1983009808
    %v97 = vunpack.c.0.s8 %v96
    %v98 = vlaneseq
    %v99 = vshrl.u32 %v98, 7
    %v100 = vsub.s32 %v97, %v99
    %v101 = vrot.slane %v21, %v100
    %v103 = vunpack.c.l.s4 1983009808
    %v104 = vunpack.c.0.s8 %v103
    %v105 = vlaneseq
    %v106 = vshrl.u32 %v105, 7
    %v107 = vsub.s32 %v104, %v106
    %v108 = vrot.slane %v94, %v107
    %v109 = vcombine.high %v101, %v101
    %v110 = vcombine.high %v108, %v108
    %115 = vmatprep.subr.mxu0 0.0
    %116 = vmatpush1.msra.mxu0 %v22
    %117 = vmatprep.subr.mxu0 0.0
    %118 = vmatpush1.msra.mxu0 %v23
    %119 = vmatprep.subr.mxu0 0.0
    %120 = vmatpush1.msra.mxu0 %v24
    %121 = vmatprep.subr.mxu0 0.0
    %122 = vmatpush1.msra.mxu0 %v25
    %123 = vmatprep.subr.mxu0 0.0
    %124 = vmatpush1.msra.mxu0 %v26
    %125 = vmatprep.subr.mxu0 0.0
    %126 = vmatpush1.msra.mxu0 %v27
    %127 = vmatprep.subr.mxu0 0.0
    %128 = vmatpush1.msra.mxu0 %v28
    %129 = vmatprep.subr.mxu0 0.0
    %130 = vmatpush1.msra.mxu0 %v29
    %131 = vmatprep.subr.mxu0 0.0
    %132 = vmatpush1.msra.mxu0 %v30
    %133 = vmatprep.subr.mxu0 0.0
    %134 = vmatpush1.msra.mxu0 %v31
    %135 = vmatprep.subr.mxu0 0.0
    %136 = vmatpush1.msra.mxu0 %v32
    %137 = vmatprep.subr.mxu0 0.0
    %138 = vmatpush1.msra.mxu0 %v33
    %139 = vmatprep.subr.mxu0 0.0
    %140 = vmatpush1.msra.mxu0 %v34
    %141 = vmatprep.subr.mxu0 0.0
    %142 = vmatpush1.msra.mxu0 %v35
    %143 = vmatprep.subr.mxu0 0.0
    %144 = vmatpush1.msra.mxu0 %v36
    %145 = vmatprep.subr.mxu0 0.0
    %146 = vmatpush1.msra.mxu0 %v37
    %147 = vmatprep.subr.mxu0 0.0
    %148 = vmatpush1.msra.mxu0 %v38
    %149 = vmatprep.subr.mxu0 0.0
    %150 = vmatpush1.msra.mxu0 %v39
    %151 = vmatprep.subr.mxu0 0.0
    %152 = vmatpush1.msra.mxu0 %v40
    %153 = vmatprep.subr.mxu0 0.0
    %154 = vmatpush1.msra.mxu0 %v41
    %155 = vmatprep.subr.mxu0 0.0
    %156 = vmatpush1.msra.mxu0 %v42
    %157 = vmatprep.subr.mxu0 0.0
    %158 = vmatpush1.msra.mxu0 %v43
    %159 = vmatprep.subr.mxu0 0.0
    %160 = vmatpush1.msra.mxu0 %v44
    %161 = vmatprep.subr.mxu0 0.0
    %162 = vmatpush1.msra.mxu0 %v45
    %163 = vmatprep.subr.mxu0 0.0
    %164 = vmatpush1.msra.mxu0 %v46
    %165 = vmatprep.subr.mxu0 0.0
    %166 = vmatpush1.msra.mxu0 %v47
    %167 = vmatprep.subr.mxu0 0.0
    %168 = vmatpush1.msra.mxu0 %v48
    %169 = vmatprep.subr.mxu0 0.0
    %170 = vmatpush1.msra.mxu0 %v49
    %171 = vmatprep.subr.mxu0 0.0
    %172 = vmatpush1.msra.mxu0 %v50
    %173 = vmatprep.subr.mxu0 0.0
    %174 = vmatpush1.msra.mxu0 %v51
    %175 = vmatprep.subr.mxu0 0.0
    %176 = vmatpush1.msra.mxu0 %v52
    %177 = vmatprep.subr.mxu0 0.0
    %178 = vmatpush1.msra.mxu0 %v53
    %179 = vmatprep.mubr.f32.mxu0 %v109
    %180 = vmatmul.mubr.f32.gmra.mrb[0].mxu0 %v101
    %v181 = vpop.f32.mrb[0].mxu0
    %v182 = vadd.f32 %v91, %v181
    %v183 = vpop.f32.mrb[0].mxu0
    %184 = vdwg.mxu0
    %185 = vmatprep.subr.mxu0 0.0
    %186 = vmatpush1.msra.mxu0 %v54
    %187 = vmatprep.subr.mxu0 0.0
    %188 = vmatpush1.msra.mxu0 %v55
    %189 = vmatprep.subr.mxu0 0.0
    %190 = vmatpush1.msra.mxu0 %v56
    %191 = vmatprep.subr.mxu0 0.0
    %192 = vmatpush1.msra.mxu0 %v57
    %193 = vmatprep.subr.mxu0 0.0
    %194 = vmatpush1.msra.mxu0 %v58
    %195 = vmatprep.subr.mxu0 0.0
    %196 = vmatpush1.msra.mxu0 %v59
    %197 = vmatprep.subr.mxu0 0.0
    %198 = vmatpush1.msra.mxu0 %v60
    %199 = vmatprep.subr.mxu0 0.0
    %200 = vmatpush1.msra.mxu0 %v61
    %201 = vmatprep.subr.mxu0 0.0
    %202 = vmatpush1.msra.mxu0 %v62
    %203 = vmatprep.subr.mxu0 0.0
    %204 = vmatpush1.msra.mxu0 %v63
    %205 = vmatprep.subr.mxu0 0.0
    %206 = vmatpush1.msra.mxu0 %v64
    %207 = vmatprep.subr.mxu0 0.0
    %208 = vmatpush1.msra.mxu0 %v65
    %209 = vmatprep.subr.mxu0 0.0
    %210 = vmatpush1.msra.mxu0 %v66
    %211 = vmatprep.subr.mxu0 0.0
    %212 = vmatpush1.msra.mxu0 %v67
    %213 = vmatprep.subr.mxu0 0.0
    %214 = vmatpush1.msra.mxu0 %v68
    %215 = vmatprep.subr.mxu0 0.0
    %216 = vmatpush1.msra.mxu0 %v69
    %217 = vmatprep.subr.mxu0 0.0
    %218 = vmatpush1.msra.mxu0 %v70
    %219 = vmatprep.subr.mxu0 0.0
    %220 = vmatpush1.msra.mxu0 %v71
    %221 = vmatprep.subr.mxu0 0.0
    %222 = vmatpush1.msra.mxu0 %v72
    %223 = vmatprep.subr.mxu0 0.0
    %224 = vmatpush1.msra.mxu0 %v73
    %225 = vmatprep.subr.mxu0 0.0
    %226 = vmatpush1.msra.mxu0 %v74
    %227 = vmatprep.subr.mxu0 0.0
    %228 = vmatpush1.msra.mxu0 %v75
    %229 = vmatprep.subr.mxu0 0.0
    %230 = vmatpush1.msra.mxu0 %v76
    %231 = vmatprep.subr.mxu0 0.0
    %232 = vmatpush1.msra.mxu0 %v77
    %233 = vmatprep.subr.mxu0 0.0
    %234 = vmatpush1.msra.mxu0 %v78
    %235 = vmatprep.subr.mxu0 0.0
    %236 = vmatpush1.msra.mxu0 %v79
    %237 = vmatprep.subr.mxu0 0.0
    %238 = vmatpush1.msra.mxu0 %v80
    %239 = vmatprep.subr.mxu0 0.0
    %240 = vmatpush1.msra.mxu0 %v81
    %241 = vmatprep.subr.mxu0 0.0
    %242 = vmatpush1.msra.mxu0 %v82
    %243 = vmatprep.subr.mxu0 0.0
    %244 = vmatpush1.msra.mxu0 %v83
    %245 = vmatprep.subr.mxu0 0.0
    %246 = vmatpush1.msra.mxu0 %v84
    %247 = vmatprep.subr.mxu0 0.0
    %248 = vmatpush1.msra.mxu0 %v85
    %249 = vmatprep.mubr.f32.mxu0 %v110
    %250 = vmatmul.mubr.f32.gmra.mrb[0].mxu0 %v108
    %v251 = vpop.f32.mrb[0].mxu0
    %v252 = vadd.f32 %v182, %v251
    %v253 = vpop.f32.mrb[0].mxu0
    %254 = vdwg.mxu0
    %v255 = vmax.f32 %v252, 0.0
    %v256 = vld [vmem:[%s3] sm:$0xff]
    %v257 = vld [vmem:[%s3 + $0x8] sm:$0xff]
    %v258 = vld [vmem:[%s4] sm:$0xf]
    %v260 = vlaneseq
    %v261 = vshrl.u32 %v260, 7
    %v262 = vsub.s32 0, %v261
    %v263 = vrot.slane %v258, %v262
    %v264 = vlaneseq
    %v265 = vshrl.u32 %v264, 7
    %v266 = vsub.s32 1, %v265
    %v267 = vrot.slane %v258, %v266
    %v268 = vlaneseq
    %v269 = vshrl.u32 %v268, 7
    %v270 = vsub.s32 2, %v269
    %v271 = vrot.slane %v258, %v270
    %v272 = vlaneseq
    %v273 = vshrl.u32 %v272, 7
    %v274 = vsub.s32 3, %v273
    %v275 = vrot.slane %v258, %v274
    %v282 = vcombine.high %v256, %v256
    %v283 = vcombine.high %v257, %v257
    %vm284 = vcmask 31744
    %v286 = vsel %vm284, %v255, 0
    %vm288 = vcmask 1043456
    %v289 = vsel %vm288, %v256, 0
    %v291 = vsel %vm288, %v282, 0
    %v293 = vsel %vm288, %v257, 0
    %v295 = vsel %vm288, %v283, 0
    %297 = vmatprep.subr.mxu0 %v291
    %298 = vmatpush1.msra.mxu0 %v289
    %299 = vmatprep.subr.mxu0 0.0
    %300 = vmatpush1.msra.mxu0 0.0
    %301 = vmatprep.subr.mxu0 0.0
    %302 = vmatpush1.msra.mxu0 0.0
    %303 = vmatprep.subr.mxu0 0.0
    %304 = vmatpush1.msra.mxu0 0.0
    %305 = vmatprep.subr.mxu0 0.0
    %306 = vmatpush1.msra.mxu0 0.0
    %307 = vmatprep.subr.mxu0 0.0
    %308 = vmatpush1.msra.mxu0 0.0
    %309 = vmatprep.subr.mxu0 0.0
    %310 = vmatpush1.msra.mxu0 0.0
    %311 = vmatprep.subr.mxu0 0.0
    %312 = vmatpush1.msra.mxu0 0.0
    %313 = vmatprep.subr.mxu0 0.0
    %314 = vmatpush1.msra.mxu0 0.0
    %315 = vmatprep.subr.mxu0 0.0
    %316 = vmatpush1.msra.mxu0 0.0
    %317 = vmatprep.subr.mxu0 0.0
    %318 = vmatpush1.msra.mxu0 0.0
    %319 = vmatprep.subr.mxu0 0.0
    %320 = vmatpush1.msra.mxu0 0.0
    %321 = vmatprep.subr.mxu0 0.0
    %322 = vmatpush1.msra.mxu0 0.0
    %323 = vmatprep.subr.mxu0 0.0
    %324 = vmatpush1.msra.mxu0 0.0
    %325 = vmatprep.subr.mxu0 0.0
    %326 = vmatpush1.msra.mxu0 0.0
    %327 = vmatprep.subr.mxu0 0.0
    %328 = vmatpush1.msra.mxu0 0.0
    %329 = vmatprep.subr.mxu0 0.0
    %330 = vmatpush1.msra.mxu0 0.0
    %331 = vmatprep.subr.mxu0 0.0
    %332 = vmatpush1.msra.mxu0 0.0
    %333 = vmatprep.subr.mxu0 0.0
    %334 = vmatpush1.msra.mxu0 0.0
    %335 = vmatprep.subr.mxu0 0.0
    %336 = vmatpush1.msra.mxu0 0.0
    %337 = vmatprep.subr.mxu0 0.0
    %338 = vmatpush1.msra.mxu0 0.0
    %339 = vmatprep.subr.mxu0 0.0
    %340 = vmatpush1.msra.mxu0 0.0
    %341 = vmatprep.subr.mxu0 0.0
    %342 = vmatpush1.msra.mxu0 0.0
    %343 = vmatprep.subr.mxu0 0.0
    %344 = vmatpush1.msra.mxu0 0.0
    %345 = vmatprep.subr.mxu0 0.0
    %346 = vmatpush1.msra.mxu0 0.0
    %347 = vmatprep.subr.mxu0 0.0
    %348 = vmatpush1.msra.mxu0 0.0
    %349 = vmatprep.subr.mxu0 0.0
    %350 = vmatpush1.msra.mxu0 0.0
    %351 = vmatprep.subr.mxu0 0.0
    %352 = vmatpush1.msra.mxu0 0.0
    %353 = vmatprep.subr.mxu0 0.0
    %354 = vmatpush1.msra.mxu0 0.0
    %355 = vmatprep.subr.mxu0 0.0
    %356 = vmatpush1.msra.mxu0 0.0
    %357 = vmatprep.subr.mxu0 0.0
    %358 = vmatpush1.msra.mxu0 0.0
    %359 = vmatprep.subr.mxu0 0.0
    %360 = vmatpush1.msra.mxu0 0.0
    %361 = vmatprep.mubr.f32.mxu0 0.0
    %362 = vmatmul.mubr.f32.gmra.mrb[0].mxu0 %v286
    %v363 = vpop.f32.mrb[0].mxu0
    %v364 = vadd.f32 %v263, %v363
    %v365 = vpop.f32.mrb[0].mxu0
    %v366 = vadd.f32 %v267, %v365
    %367 = vdwg.mxu0
    %368 = vmatprep.subr.mxu0 %v295
    %369 = vmatpush1.msra.mxu0 %v293
    %370 = vmatprep.subr.mxu0 0.0
    %371 = vmatpush1.msra.mxu0 0.0
    %372 = vmatprep.subr.mxu0 0.0
    %373 = vmatpush1.msra.mxu0 0.0
    %374 = vmatprep.subr.mxu0 0.0
    %375 = vmatpush1.msra.mxu0 0.0
    %376 = vmatprep.subr.mxu0 0.0
    %377 = vmatpush1.msra.mxu0 0.0
    %378 = vmatprep.subr.mxu0 0.0
    %379 = vmatpush1.msra.mxu0 0.0
    %380 = vmatprep.subr.mxu0 0.0
    %381 = vmatpush1.msra.mxu0 0.0
    %382 = vmatprep.subr.mxu0 0.0
    %383 = vmatpush1.msra.mxu0 0.0
    %384 = vmatprep.subr.mxu0 0.0
    %385 = vmatpush1.msra.mxu0 0.0
    %386 = vmatprep.subr.mxu0 0.0
    %387 = vmatpush1.msra.mxu0 0.0
    %388 = vmatprep.subr.mxu0 0.0
    %389 = vmatpush1.msra.mxu0 0.0
    %390 = vmatprep.subr.mxu0 0.0
    %391 = vmatpush1.msra.mxu0 0.0
    %392 = vmatprep.subr.mxu0 0.0
    %393 = vmatpush1.msra.mxu0 0.0
    %394 = vmatprep.subr.mxu0 0.0
    %395 = vmatpush1.msra.mxu0 0.0
    %396 = vmatprep.subr.mxu0 0.0
    %397 = vmatpush1.msra.mxu0 0.0
    %398 = vmatprep.subr.mxu0 0.0
    %399 = vmatpush1.msra.mxu0 0.0
    %400 = vmatprep.subr.mxu0 0.0
    %401 = vmatpush1.msra.mxu0 0.0
    %402 = vmatprep.subr.mxu0 0.0
    %403 = vmatpush1.msra.mxu0 0.0
    %404 = vmatprep.subr.mxu0 0.0
    %405 = vmatpush1.msra.mxu0 0.0
    %406 = vmatprep.subr.mxu0 0.0
    %407 = vmatpush1.msra.mxu0 0.0
    %408 = vmatprep.subr.mxu0 0.0
    %409 = vmatpush1.msra.mxu0 0.0
    %410 = vmatprep.subr.mxu0 0.0
    %411 = vmatpush1.msra.mxu0 0.0
    %412 = vmatprep.subr.mxu0 0.0
    %413 = vmatpush1.msra.mxu0 0.0
    %414 = vmatprep.subr.mxu0 0.0
    %415 = vmatpush1.msra.mxu0 0.0
    %416 = vmatprep.subr.mxu0 0.0
    %417 = vmatpush1.msra.mxu0 0.0
    %418 = vmatprep.subr.mxu0 0.0
    %419 = vmatpush1.msra.mxu0 0.0
    %420 = vmatprep.subr.mxu0 0.0
    %421 = vmatpush1.msra.mxu0 0.0
    %422 = vmatprep.subr.mxu0 0.0
    %423 = vmatpush1.msra.mxu0 0.0
    %424 = vmatprep.subr.mxu0 0.0
    %425 = vmatpush1.msra.mxu0 0.0
    %426 = vmatprep.subr.mxu0 0.0
    %427 = vmatpush1.msra.mxu0 0.0
    %428 = vmatprep.subr.mxu0 0.0
    %429 = vmatpush1.msra.mxu0 0.0
    %430 = vmatprep.subr.mxu0 0.0
    %431 = vmatpush1.msra.mxu0 0.0
    %432 = vmatprep.mubr.f32.mxu0 0.0
    %433 = vmatmul.mubr.f32.gmra.mrb[0].mxu0 %v286
    %v434 = vpop.f32.mrb[0].mxu0
    %v435 = vadd.f32 %v271, %v434
    %v436 = vpop.f32.mrb[0].mxu0
    %v437 = vadd.f32 %v275, %v436
    %438 = vdwg.mxu0
    %v439 = vxor.u32 %v364, 2147483648
    %v440 = vxor.u32 %v366, 2147483648
    %v441 = vxor.u32 %v435, 2147483648
    %v442 = vxor.u32 %v437, 2147483648
    %v443 = vmul.f32 %v439, 1.442695
    %v444 = vpow.pop %v443
    %v445 = vmul.f32 %v440, 1.442695
    %v446 = vpow.pop %v445
    %v447 = vmul.f32 %v441, 1.442695
    %v448 = vpow.pop %v447
    %v449 = vmul.f32 %v442, 1.442695
    %v450 = vpow.pop %v449
    %v451 = vadd.f32 %v444, 1.0
    %v452 = vadd.f32 %v446, 1.0
    %v453 = vadd.f32 %v448, 1.0
    %v454 = vadd.f32 %v450, 1.0
    %v455 = vrcp.pop %v451
    %v456 = vmul.f32 1.0, %v455
    %v457 = vrcp.pop %v452
    %v458 = vmul.f32 1.0, %v457
    %v459 = vrcp.pop %v453
    %v460 = vmul.f32 1.0, %v459
    %v461 = vrcp.pop %v454
    %v462 = vmul.f32 1.0, %v461
    %v467 = vcombine.low %v456, %v458
    %v468 = vcombine.low %v460, %v462
    %v470 = vunpack.c.l.s4 1983009808
    %v471 = vunpack.c.0.s8 %v470
    %v472 = vlaneseq
    %v473 = vshrl.u32 %v472, 7
    %v474 = vsub.s32 %v471, %v473
    %v475 = vrot.slane %v467, %v474
    %v477 = vunpack.c.l.s4 1983009808
    %v478 = vunpack.c.0.s8 %v477
    %v479 = vlaneseq
    %v480 = vshrl.u32 %v479, 7
    %v481 = vsub.s32 %v478, %v480
    %v482 = vrot.slane %v468, %v481
    %v483 = vcombine.low %v475, %v482
    %v485 = vmul.f32 %v21, %v483
    %486 = vst [vmem:[#allocation2] sm:$0xff] %v485
    // Predicated region
    $region22: #{tpu_custom_call.1} parent=1 // pred_check
      _
    $region23: #{tpu_custom_call.1} parent=1 // pred_check_branch
      %488 = sbr.rel (0) target = $region25
    $region24: #{tpu_custom_call.1} parent=1 // pred_region
      %s490 = ssub.s32 128, 128
      %491 = vsyncadd [#allocation3], %s490
      %s493 = sshll.u32 [#allocation2], 4
      %s494 = int_to_ptr.vmem [resolvable:$true] %s493
      %496 = dma.vmem_to_hbm [thread:$0]  %s494, 128, %s5, [#allocation3]
    $region25: #{tpu_custom_call.1} parent=1 // pred_fallthru
      _
    // Predicated region
    $region26: #{tpu_custom_call.1} parent=1 // pred_check
      _
    $region27: #{tpu_custom_call.1} parent=1 // pred_check_branch
      %498 = sbr.rel (0) target = $region29
    $region28: #{tpu_custom_call.1} parent=1 // pred_region
      %499 = dma.done [#allocation3], 128
    $region29: #{tpu_custom_call.1} parent=1 // pred_fallthru
      _
    %500 = vsyncpa [#allocation3], 1

</llo_original>
